<compile_context>
chip_gen: v7x
topology: tpu7x:2x2x1
jax: 0.10.0
libtpu: 0.0.40
codegen_flags: <defaults>
</compile_context>

<pallas_src>
import jax
import jax.numpy as jnp
from jax.experimental import pallas as pl
from jax.experimental.pallas import tpu as pltpu


LANES = 1024          # last dim of the lane-dense slab (multiple of 128)
MAX_TILE_ROWS = 512   # 512 x 1024 x 4 B = 2 MiB per tile
SMALL_N = 2048        # below this many elements, plain JAX beats kernel overhead


def _linreg_kernel(w_ref, b_ref, x_ref, o_ref):
    # w_ref, b_ref: SMEM scalars of shape (1,)
    # x_ref, o_ref: VMEM tiles of shape (tm, LANES)
    o_ref[...] = w_ref[0] * x_ref[...] + b_ref[0]


def _round_up(a: int, b: int) -> int:
    return -(-a // b) * b


def linear_regression_forward(
    x: jax.Array,
    weight: jax.Array,
    bias: jax.Array,
    *,
    min_pallas_elems: int = SMALL_N,
) -> jax.Array:
    """y = weight * x + bias (scalar weight/bias, broadcast over x)."""
    n = x.size

    # Tiny inputs: let XLA fuse the affine; Pallas launch overhead dominates.
    if n < min_pallas_elems:
        return (weight[0] * x + bias[0]).astype(x.dtype)

    orig_shape = x.shape

    # --- lane-dense reshape + padding ---------------------------------------
    rows = -(-n // LANES)
    if rows <= MAX_TILE_ROWS:
        tm = _round_up(rows, 8)          # single tile, rows rounded to sublane
    else:
        tm = MAX_TILE_ROWS
    rows_padded = _round_up(rows, tm)
    padded_len = rows_padded * LANES

    flat = x.reshape(-1)
    if padded_len != n:
        flat = jnp.pad(flat, (0, padded_len - n))
    slab = flat.reshape(rows_padded, LANES)

    grid = (rows_padded // tm,)

    out = pl.pallas_call(
        _linreg_kernel,
        out_shape=jax.ShapeDtypeStruct(slab.shape, slab.dtype),
        grid=grid,
        in_specs=[
            pl.BlockSpec(memory_space=pltpu.SMEM),        # weight (1,)
            pl.BlockSpec(memory_space=pltpu.SMEM),        # bias   (1,)
            pl.BlockSpec((tm, LANES), lambda i: (i, 0)),  # x tile
        ],
        out_specs=pl.BlockSpec((tm, LANES), lambda i: (i, 0)),
        compiler_params=pltpu.CompilerParams(
            dimension_semantics=("parallel",),
        ),
    )(weight, bias, slab)

    # --- undo padding / reshape back ----------------------------------------
    return out.reshape(-1)[:n].reshape(orig_shape)


if __name__ == "__main__":
    key = jax.random.PRNGKey(0)
    kw, kb, kx_small, kx_big = jax.random.split(key, 4)

    # Parameter init mirrors nn.Parameter(torch.randn(1))
    weight = jax.random.normal(kw, (1,), dtype=jnp.float32)
    bias = jax.random.normal(kb, (1,), dtype=jnp.float32)

    # 1) Small (N, 1) input, matching the classic workflow -> plain-JAX fast path
    x_small = jax.random.normal(kx_small, (8, 1), dtype=jnp.float32)
    y_small = jax.block_until_ready(linear_regression_forward(x_small, weight, bias))
    ref_small = weight[0] * x_small + bias[0]
    assert y_small.shape == x_small.shape and y_small.dtype == x_small.dtype
    assert jnp.allclose(y_small, ref_small, atol=1e-6, rtol=1e-6)

    # 2) Larger (N, 1) input -> exercises the tiled, lane-dense Pallas kernel
    x_big = jax.random.normal(kx_big, (8192, 1), dtype=jnp.float32)
    y_big = jax.block_until_ready(
        linear_regression_forward(x_big, weight, bias, min_pallas_elems=1)
    )
    ref_big = weight[0] * x_big + bias[0]
    assert y_big.shape == x_big.shape and y_big.dtype == x_big.dtype
    assert jnp.allclose(y_big, ref_big, atol=1e-6, rtol=1e-6)

    print("KERNEL_OK")
</pallas_src>

<mosaic_0001>
module attributes {stable_mosaic.version = 11 : i64} {
  func.func @_linreg_kernel(%arg0: i32, %arg1: memref<1xf32, #tpu.memory_space<smem>>, %arg2: memref<1xf32, #tpu.memory_space<smem>>, %arg3: memref<8x1024xf32, #tpu.memory_space<vmem>>, %arg4: memref<8x1024xf32, #tpu.memory_space<vmem>>) attributes {dimension_semantics = [#tpu.dimension_semantics<parallel>], iteration_bounds = array<i64: 1>, scalar_prefetch = 0 : i64, scratch_operands = 0 : i64, tpu.core_type = #tpu.core_type<tc>, window_params = [{transform_indices = @transform_0, window_bounds = array<i64: 1>}, {transform_indices = @transform_1, window_bounds = array<i64: 1>}, {transform_indices = @transform_2, window_bounds = array<i64: 8, 1024>}, {transform_indices = @transform_3, window_bounds = array<i64: 8, 1024>}]} {
    %c0 = arith.constant 0 : index
    %0 = memref.load %arg1[%c0] : memref<1xf32, #tpu.memory_space<smem>>
    %c0_0 = arith.constant 0 : index
    %c0_1 = arith.constant 0 : index
    %1 = vector.load %arg3[%c0_0, %c0_1] : memref<8x1024xf32, #tpu.memory_space<vmem>>, vector<8x1024xf32>
    %2 = vector.broadcast %0 : f32 to vector<8x1024xf32>
    %3 = arith.mulf %2, %1 : vector<8x1024xf32>
    %c0_2 = arith.constant 0 : index
    %4 = memref.load %arg2[%c0_2] : memref<1xf32, #tpu.memory_space<smem>>
    %5 = vector.broadcast %4 : f32 to vector<8x1024xf32>
    %6 = arith.addf %3, %5 : vector<8x1024xf32>
    %c0_3 = arith.constant 0 : index
    %c0_4 = arith.constant 0 : index
    %7 = vector.load %arg4[%c0_3, %c0_4] : memref<8x1024xf32, #tpu.memory_space<vmem>>, vector<8x1024xf32>
    tpu.vector_store %arg4[%c0_3, %c0_4], %6 {strides = array<i32>} : memref<8x1024xf32, #tpu.memory_space<vmem>>, vector<8x1024xf32>,
    return
  }
  func.func @transform_0(%arg0: i32) -> i32 {
    %c0_i32 = arith.constant 0 : i32
    %c0_i32_0 = arith.constant 0 : i32
    return %c0_i32 : i32
  }
  func.func @transform_1(%arg0: i32) -> i32 {
    %c0_i32 = arith.constant 0 : i32
    %c0_i32_0 = arith.constant 0 : i32
    return %c0_i32 : i32
  }
  func.func @transform_2(%arg0: i32) -> (i32, i32) {
    %c0_i32 = arith.constant 0 : i32
    %c0_i32_0 = arith.constant 0 : i32
    return %arg0, %c0_i32 : i32, i32
  }
  func.func @transform_3(%arg0: i32) -> (i32, i32) {
    %c0_i32 = arith.constant 0 : i32
    %c0_i32_0 = arith.constant 0 : i32
    return %arg0, %c0_i32 : i32, i32
  }
}

</mosaic_0001>

<llo_original>
// kernel: tpu_custom_call.1
$region0: #{tpu_custom_call.1}
  #allocation0 [shape = 'u32[]', space=smem, size = 0x4, offset = 0x4, fixed_abs, tag = 'smem constant byte address 0x4 - core index']
  #allocation1 [shape = 'u32[144,128]{1,0:T(1,128)}', space=vmem, size = 0x12000, scoped, tag = 'internal scratch']
  #allocation2 [shape = 'f32[1]{0:T(128)S(6)}', space=smem, size = 0x200, scoped, tag = 'scoped memory for tpu_custom_call.1']
  #allocation3 [shape = 'f32[1]{0:T(128)S(6)}', space=smem, size = 0x200, scoped, tag = 'scoped memory for tpu_custom_call.1']
  %s0 = inlined_call_operand.<no memory space> [shape: f32[1], index: 0, kind: input, shape index: {}]
  %s1 = inlined_call_operand.<no memory space> [shape: f32[1], index: 1, kind: input, shape index: {}]
  %s2 = inlined_call_operand.hbm [shape: f32[8,1024], index: 2, kind: input, shape index: {}]
  %s3 = inlined_call_operand.hbm [shape: f32[8,1024], index: 3, kind: output, shape index: {}]
  %s4 = sld [smem:[#allocation0]]
  $region26: #{tpu_custom_call.1} parent=0
    _
  %s6 = ssub.s32 1, %s4
  %s7 = scalar_select 0, %s6, %s4
  %8 = sst [smem:[#allocation2]] %s0
  %9 = sst [smem:[#allocation3]] %s1
  $region1: #{tpu_custom_call.1} parent=0
    #allocation4 [shape = 'u8[32768]{0}', space=vmem, size = 0x8000, scoped, tag = 'input window, operand 2, single buffered']
    #allocation5 [shape = 's32[1]{0}', space=sflag, size = 0x4, scoped, tag = 'scoped memory for tpu_custom_call.1']
    #allocation6 [shape = 's32[1]{0}', space=sflag, size = 0x4, scoped, tag = 'scoped memory for tpu_custom_call.1']
    #allocation7 [shape = 'u8[32768]{0}', space=vmem, size = 0x8000, scoped, tag = 'output window, operand 0, single buffered']
    %10 = vsyncpa [#allocation5], 0
    %11 = vsyncpa [#allocation6], 0
    // Predicated region
    $region2: #{tpu_custom_call.1} parent=1 // pred_check
      _
    $region3: #{tpu_custom_call.1} parent=1 // pred_check_branch
      %13 = sbr.rel (0) target = $region5
    $region4: #{tpu_custom_call.1} parent=1 // pred_region
      _
    $region5: #{tpu_custom_call.1} parent=1 // pred_fallthru
      _
    // Predicated region
    $region6: #{tpu_custom_call.1} parent=1 // pred_check
      _
    $region7: #{tpu_custom_call.1} parent=1 // pred_check_branch
      %15 = sbr.rel (0) target = $region9
    $region8: #{tpu_custom_call.1} parent=1 // pred_region
      _
    $region9: #{tpu_custom_call.1} parent=1 // pred_fallthru
      _
    // Predicated region
    $region10: #{tpu_custom_call.1} parent=1 // pred_check
      _
    $region11: #{tpu_custom_call.1} parent=1 // pred_check_branch
      %17 = sbr.rel (0) target = $region13
    $region12: #{tpu_custom_call.1} parent=1 // pred_region
      %s19 = ssub.s32 1024, 1024
      %20 = vsyncadd [#allocation5], %s19
      %s22 = sshll.u32 [#allocation4], 4
      %s23 = int_to_ptr.vmem [resolvable:$true] %s22
      %25 = dma.hbm_to_vmem [thread:$0]  %s2, 1024, %s23, [#allocation5]
    $region13: #{tpu_custom_call.1} parent=1 // pred_fallthru
      _
    // Predicated region
    $region14: #{tpu_custom_call.1} parent=1 // pred_check
      _
    $region15: #{tpu_custom_call.1} parent=1 // pred_check_branch
      %27 = sbr.rel (0) target = $region17
    $region16: #{tpu_custom_call.1} parent=1 // pred_region
      %28 = dma.done [#allocation5], 1024
    $region17: #{tpu_custom_call.1} parent=1 // pred_fallthru
      _
    %s29 = sld [smem:[#allocation2]]
    %v30 = vld [vmem:[#allocation4] sm:$0xff]
    %v31 = vld [vmem:[#allocation4 + $0x8] sm:$0xff]
    %v32 = vld [vmem:[#allocation4 + $0x10] sm:$0xff]
    %v33 = vld [vmem:[#allocation4 + $0x18] sm:$0xff]
    %v34 = vld [vmem:[#allocation4 + $0x20] sm:$0xff]
    %v35 = vld [vmem:[#allocation4 + $0x28] sm:$0xff]
    %v36 = vld [vmem:[#allocation4 + $0x30] sm:$0xff]
    %v37 = vld [vmem:[#allocation4 + $0x38] sm:$0xff]
    %v38 = vstv %s29
    %v39 = vmul.f32 %v38, %v30
    %v40 = vmul.f32 %v38, %v31
    %v41 = vmul.f32 %v38, %v32
    %v42 = vmul.f32 %v38, %v33
    %v43 = vmul.f32 %v38, %v34
    %v44 = vmul.f32 %v38, %v35
    %v45 = vmul.f32 %v38, %v36
    %v46 = vmul.f32 %v38, %v37
    %s47 = sld [smem:[#allocation3]]
    %v48 = vstv %s47
    %v49 = vadd.f32 %v39, %v48
    %v50 = vadd.f32 %v40, %v48
    %v51 = vadd.f32 %v41, %v48
    %v52 = vadd.f32 %v42, %v48
    %v53 = vadd.f32 %v43, %v48
    %v54 = vadd.f32 %v44, %v48
    %v55 = vadd.f32 %v45, %v48
    %v56 = vadd.f32 %v46, %v48
    %57 = vst [vmem:[#allocation7] sm:$0xff] %v49
    %58 = vst [vmem:[#allocation7 + $0x8] sm:$0xff] %v50
    %59 = vst [vmem:[#allocation7 + $0x10] sm:$0xff] %v51
    %60 = vst [vmem:[#allocation7 + $0x18] sm:$0xff] %v52
    %61 = vst [vmem:[#allocation7 + $0x20] sm:$0xff] %v53
    %62 = vst [vmem:[#allocation7 + $0x28] sm:$0xff] %v54
    %63 = vst [vmem:[#allocation7 + $0x30] sm:$0xff] %v55
    %64 = vst [vmem:[#allocation7 + $0x38] sm:$0xff] %v56
    // Predicated region
    $region18: #{tpu_custom_call.1} parent=1 // pred_check
      _
    $region19: #{tpu_custom_call.1} parent=1 // pred_check_branch
      %66 = sbr.rel (0) target = $region21
    $region20: #{tpu_custom_call.1} parent=1 // pred_region
      %s68 = ssub.s32 1024, 1024
      %69 = vsyncadd [#allocation6], %s68
      %s71 = sshll.u32 [#allocation7], 4
      %s72 = int_to_ptr.vmem [resolvable:$true] %s71
      %74 = dma.vmem_to_hbm [thread:$0]  %s72, 1024, %s3, [#allocation6]
    $region21: #{tpu_custom_call.1} parent=1 // pred_fallthru
      _
    // Predicated region
    $region22: #{tpu_custom_call.1} parent=1 // pred_check
      _
    $region23: #{tpu_custom_call.1} parent=1 // pred_check_branch
      %76 = sbr.rel (0) target = $region25
    $region24: #{tpu_custom_call.1} parent=1 // pred_region
      %77 = dma.done [#allocation6], 1024
    $region25: #{tpu_custom_call.1} parent=1 // pred_fallthru
      _
    %78 = vsyncpa [#allocation5], 1
    %79 = vsyncpa [#allocation6], 1

</llo_original>
